<compile_context>
chip_gen: v7x
topology: tpu7x:2x2x1
jax: 0.10.0
libtpu: 0.0.40
codegen_flags: <defaults>
</compile_context>

<pallas_src>
import functools

import jax
import jax.numpy as jnp
from jax.experimental import pallas as pl
from jax.experimental.pallas import tpu as pltpu

LEAKY_SLOPE = 0.01  # nn.LeakyReLU() default negative_slope
LANE = 128
SUBLANE = 8


def _round_up(n, m):
    return (n + m - 1) // m * m


def _cdiv(a, b):
    return (a + b - 1) // b


def _ae_do_kernel(n_layers, x_ref, *refs):
    """Whole AE_DO forward for one (TB, Pin_0) batch tile.

    refs = (w_0, b_0, w_1, b_1, ..., w_{L-1}, b_{L-1}, out_ref)
      x_ref : (TB, Pin_0)     padded f32 input tile
      w_i   : (Pin_i, Pout_i) per-layer zero-padded weights (bf16 or f32)
      b_i   : (1, Pout_i)     per-layer zero-padded f32 bias
      out   : (TB, Pout_last) padded f32 output tile
    All layers except the last are followed by LeakyReLU; the final decoder
    layer is linear (AE_DO variant — no sigmoid).
    """
    out_ref = refs[-1]
    h = x_ref[...]  # f32 activations carried between layers
    for i in range(n_layers):
        w = refs[2 * i][...]        # (Pin_i, Pout_i), bf16 fast path or f32
        b = refs[2 * i + 1][...]    # (1, Pout_i), f32
        # Cast only at the dot input; accumulate in f32 on the MXU.  Bias add
        # and LeakyReLU stay f32 on the VPU (no bf16 elementwise on v5e).
        h = jnp.dot(h.astype(w.dtype), w, preferred_element_type=jnp.float32) + b
        if i < n_layers - 1:
            h = jnp.maximum(h, LEAKY_SLOPE * h)  # LeakyReLU, single VALU op
    out_ref[...] = h.astype(out_ref.dtype)


def pack_ae_do_params(weights, biases, *, use_bf16=True):
    """Zero-pad each layer to its own lane-dense shape (no global P_max).

    weights: list of (in_i, out_i) f32
    biases:  list of (1, out_i)  f32
    returns  (padded_weights, padded_biases) lists.  Weights are bf16 when
             use_bf16 (MXU-native), biases stay f32.
    """
    assert len(weights) == len(biases)
    w_dtype = jnp.bfloat16 if use_bf16 else jnp.float32
    padded_w, padded_b = [], []
    for w, b in zip(weights, biases):
        fi, fo = w.shape
        pi, po = _round_up(fi, LANE), _round_up(fo, LANE)
        wp = jnp.zeros((pi, po), jnp.float32).at[:fi, :fo].set(w).astype(w_dtype)
        bp = jnp.zeros((1, po), jnp.float32).at[:, :fo].set(b)
        padded_w.append(wp)
        padded_b.append(bp)
    return padded_w, padded_b


def ae_do_forward(x, padded_w, padded_b, d_out, *, block_b=1024, min_grid_steps=2):
    """Run the AE_DO forward pass via a batch-tiled pallas_call.

    x:        (B, d_in) float32
    padded_w: list of per-layer padded weights (from pack_ae_do_params)
    padded_b: list of per-layer padded biases
    d_out:    true output feature count (final output is sliced to this)
    returns   {'output': (B, d_out) float32}
    """
    n_layers = len(padded_w)
    B, d_in = x.shape
    p_in = padded_w[0].shape[0]
    p_out = padded_w[-1].shape[1]

    # Balanced batch tiling: pick the number of tiles first (>= min_grid_steps
    # when the batch is big enough, so v7x's two TensorCores both get work),
    # then size tb to spread rows evenly -> minimal trailing-tile padding.
    n_tiles = max(_cdiv(B, block_b), 1)
    if B > SUBLANE:
        n_tiles = max(n_tiles, min_grid_steps)
    tb = _round_up(_cdiv(B, n_tiles), SUBLANE)
    n_tiles = _cdiv(B, tb)
    b_pad = n_tiles * tb

    # Pad x to (b_pad, p_in); padded rows/lanes are zeros, sliced away below.
    x_pad = jnp.zeros((b_pad, p_in), jnp.float32).at[:B, :d_in].set(x)

    # x tile marches over the batch axis (double-buffered); each per-layer
    # weight/bias has a constant index_map so it stays VMEM-resident.
    in_specs = [pl.BlockSpec((tb, p_in), lambda i: (i, 0))]
    operands = [x_pad]
    for w, b in zip(padded_w, padded_b):
        in_specs.append(pl.BlockSpec(w.shape, lambda i: (0, 0)))
        in_specs.append(pl.BlockSpec(b.shape, lambda i: (0, 0)))
        operands.append(w)
        operands.append(b)

    out = pl.pallas_call(
        functools.partial(_ae_do_kernel, n_layers),
        out_shape=jax.ShapeDtypeStruct((b_pad, p_out), jnp.float32),
        grid_spec=pl.GridSpec(
            grid=(n_tiles,),
            in_specs=in_specs,
            out_specs=pl.BlockSpec((tb, p_out), lambda i: (i, 0)),
        ),
        compiler_params=pltpu.CompilerParams(
            # Batch axis is embarrassingly parallel -> shard across TCs (v7x).
            dimension_semantics=("parallel",),
        ),
    )(*operands)

    return {"output": out[:B, :d_out]}


def init_ae_do_params(key, d_dim, layer_dims):
    """Deterministic parameter init matching AE_DO.__init__ layer shapes.

    Encoder: d_dim -> layer_dims[0] -> ... -> layer_dims[-1]   (LeakyReLU each)
    Decoder: reversed(layer_dims) chain (LeakyReLU each) -> d_dim (no actv)
    """
    enc_dims = [d_dim] + list(layer_dims)
    rev = list(reversed(layer_dims))
    dec_dims = rev + [d_dim]
    all_in = enc_dims[:-1] + dec_dims[:-1]
    all_out = enc_dims[1:] + dec_dims[1:]

    weights, biases = [], []
    for fan_in, fan_out in zip(all_in, all_out):
        key, kw, kb = jax.random.split(key, 3)
        bound = 1.0 / jnp.sqrt(jnp.float32(fan_in))  # torch.nn.Linear default
        w = jax.random.uniform(kw, (fan_in, fan_out), jnp.float32, -bound, bound)
        b = jax.random.uniform(kb, (1, fan_out), jnp.float32, -bound, bound)
        weights.append(w)
        biases.append(b)
    return weights, biases


def ae_do_reference(x, weights, biases):
    """Pure-JAX f32 reference of the same forward pass (for verification)."""
    h = x
    n = len(weights)
    for i, (w, b) in enumerate(zip(weights, biases)):
        h = h @ w + b
        if i < n - 1:
            h = jnp.where(h > 0, h, LEAKY_SLOPE * h)
    return h


if __name__ == "__main__":
    # model_config = {'d_dim': 16, 'layers': [32, 16, 8]}
    d_dim = 16
    layer_dims = [32, 16, 8]
    batch = 8

    key = jax.random.PRNGKey(0)
    key, kx = jax.random.split(key)
    x = jax.random.normal(kx, (batch, d_dim), jnp.float32)

    weights, biases = init_ae_do_params(key, d_dim, layer_dims)
    y_ref = ae_do_reference(x, weights, biases)

    # --- f32 parity path: bit-faithful to the PyTorch f32 module ---
    w32, b32 = pack_ae_do_params(weights, biases, use_bf16=False)
    y32 = jax.block_until_ready(ae_do_forward(x, w32, b32, d_dim)["output"])
    assert y32.shape == (batch, d_dim)
    assert jnp.allclose(y32, y_ref, atol=1e-5, rtol=1e-5)

    # --- bf16 fast path: bf16 into the MXU, f32 accumulation/elementwise ---
    wbf, bbf = pack_ae_do_params(weights, biases, use_bf16=True)
    ybf = jax.block_until_ready(ae_do_forward(x, wbf, bbf, d_dim)["output"])
    assert ybf.shape == (batch, d_dim)
    assert jnp.allclose(ybf, y_ref, atol=1e-1, rtol=5e-2)

    print("KERNEL_OK")
</pallas_src>

<mosaic_0001>
module attributes {stable_mosaic.version = 11 : i64} {
  func.func @_ae_do_kernel(%arg0: i32, %arg1: memref<8x128xf32, #tpu.memory_space<vmem>>, %arg2: memref<128x128xf32, #tpu.memory_space<vmem>>, %arg3: memref<1x128xf32, #tpu.memory_space<vmem>>, %arg4: memref<128x128xf32, #tpu.memory_space<vmem>>, %arg5: memref<1x128xf32, #tpu.memory_space<vmem>>, %arg6: memref<128x128xf32, #tpu.memory_space<vmem>>, %arg7: memref<1x128xf32, #tpu.memory_space<vmem>>, %arg8: memref<128x128xf32, #tpu.memory_space<vmem>>, %arg9: memref<1x128xf32, #tpu.memory_space<vmem>>, %arg10: memref<128x128xf32, #tpu.memory_space<vmem>>, %arg11: memref<1x128xf32, #tpu.memory_space<vmem>>, %arg12: memref<128x128xf32, #tpu.memory_space<vmem>>, %arg13: memref<1x128xf32, #tpu.memory_space<vmem>>, %arg14: memref<8x128xf32, #tpu.memory_space<vmem>>) attributes {dimension_semantics = [#tpu.dimension_semantics<parallel>], iteration_bounds = array<i64: 1>, scalar_prefetch = 0 : i64, scratch_operands = 0 : i64, tpu.core_type = #tpu.core_type<tc>, window_params = [{transform_indices = @transform_0, window_bounds = array<i64: 8, 128>}, {pipeline_mode = #tpu.pipeline_mode<synchronous>, transform_indices = @transform_1, window_bounds = array<i64: 128, 128>}, {pipeline_mode = #tpu.pipeline_mode<synchronous>, transform_indices = @transform_2, window_bounds = array<i64: 1, 128>}, {pipeline_mode = #tpu.pipeline_mode<synchronous>, transform_indices = @transform_3, window_bounds = array<i64: 128, 128>}, {pipeline_mode = #tpu.pipeline_mode<synchronous>, transform_indices = @transform_4, window_bounds = array<i64: 1, 128>}, {pipeline_mode = #tpu.pipeline_mode<synchronous>, transform_indices = @transform_5, window_bounds = array<i64: 128, 128>}, {pipeline_mode = #tpu.pipeline_mode<synchronous>, transform_indices = @transform_6, window_bounds = array<i64: 1, 128>}, {pipeline_mode = #tpu.pipeline_mode<synchronous>, transform_indices = @transform_7, window_bounds = array<i64: 128, 128>}, {pipeline_mode = #tpu.pipeline_mode<synchronous>, transform_indices = @transform_8, window_bounds = array<i64: 1, 128>}, {pipeline_mode = #tpu.pipeline_mode<synchronous>, transform_indices = @transform_9, window_bounds = array<i64: 128, 128>}, {pipeline_mode = #tpu.pipeline_mode<synchronous>, transform_indices = @transform_10, window_bounds = array<i64: 1, 128>}, {pipeline_mode = #tpu.pipeline_mode<synchronous>, transform_indices = @transform_11, window_bounds = array<i64: 128, 128>}, {pipeline_mode = #tpu.pipeline_mode<synchronous>, transform_indices = @transform_12, window_bounds = array<i64: 1, 128>}, {transform_indices = @transform_13, window_bounds = array<i64: 8, 128>}]} {
    %c0 = arith.constant 0 : index
    %c0_0 = arith.constant 0 : index
    %0 = vector.load %arg1[%c0, %c0_0] : memref<8x128xf32, #tpu.memory_space<vmem>>, vector<8x128xf32>
    %c0_1 = arith.constant 0 : index
    %c0_2 = arith.constant 0 : index
    %1 = vector.load %arg2[%c0_1, %c0_2] : memref<128x128xf32, #tpu.memory_space<vmem>>, vector<128x128xf32>
    %c0_3 = arith.constant 0 : index
    %c0_4 = arith.constant 0 : index
    %2 = vector.load %arg3[%c0_3, %c0_4] : memref<1x128xf32, #tpu.memory_space<vmem>>, vector<1x128xf32>
    %cst = arith.constant dense<0.000000e+00> : vector<8x128xf32>
    %3 = tpu.matmul %0, %1, %cst {dimension_numbers = #tpu.dot_dimension_numbers<[1], [0], [0], [1], [0, 0, 1, 1], [], []>} : vector<8x128xf32>, vector<128x128xf32>, vector<8x128xf32> -> vector<8x128xf32>
    %4 = vector.broadcast %2 : vector<1x128xf32> to vector<8x128xf32>
    %5 = arith.addf %3, %4 : vector<8x128xf32>
    %cst_5 = arith.constant 0.00999999977 : f32
    %6 = vector.broadcast %cst_5 : f32 to vector<8x128xf32>
    %7 = arith.mulf %6, %5 : vector<8x128xf32>
    %8 = arith.maximumf %5, %7 : vector<8x128xf32>
    %c0_6 = arith.constant 0 : index
    %c0_7 = arith.constant 0 : index
    %9 = vector.load %arg4[%c0_6, %c0_7] : memref<128x128xf32, #tpu.memory_space<vmem>>, vector<128x128xf32>
    %c0_8 = arith.constant 0 : index
    %c0_9 = arith.constant 0 : index
    %10 = vector.load %arg5[%c0_8, %c0_9] : memref<1x128xf32, #tpu.memory_space<vmem>>, vector<1x128xf32>
    %cst_10 = arith.constant dense<0.000000e+00> : vector<8x128xf32>
    %11 = tpu.matmul %8, %9, %cst_10 {dimension_numbers = #tpu.dot_dimension_numbers<[1], [0], [0], [1], [0, 0, 1, 1], [], []>} : vector<8x128xf32>, vector<128x128xf32>, vector<8x128xf32> -> vector<8x128xf32>
    %12 = vector.broadcast %10 : vector<1x128xf32> to vector<8x128xf32>
    %13 = arith.addf %11, %12 : vector<8x128xf32>
    %cst_11 = arith.constant 0.00999999977 : f32
    %14 = vector.broadcast %cst_11 : f32 to vector<8x128xf32>
    %15 = arith.mulf %14, %13 : vector<8x128xf32>
    %16 = arith.maximumf %13, %15 : vector<8x128xf32>
    %c0_12 = arith.constant 0 : index
    %c0_13 = arith.constant 0 : index
    %17 = vector.load %arg6[%c0_12, %c0_13] : memref<128x128xf32, #tpu.memory_space<vmem>>, vector<128x128xf32>
    %c0_14 = arith.constant 0 : index
    %c0_15 = arith.constant 0 : index
    %18 = vector.load %arg7[%c0_14, %c0_15] : memref<1x128xf32, #tpu.memory_space<vmem>>, vector<1x128xf32>
    %cst_16 = arith.constant dense<0.000000e+00> : vector<8x128xf32>
    %19 = tpu.matmul %16, %17, %cst_16 {dimension_numbers = #tpu.dot_dimension_numbers<[1], [0], [0], [1], [0, 0, 1, 1], [], []>} : vector<8x128xf32>, vector<128x128xf32>, vector<8x128xf32> -> vector<8x128xf32>
    %20 = vector.broadcast %18 : vector<1x128xf32> to vector<8x128xf32>
    %21 = arith.addf %19, %20 : vector<8x128xf32>
    %cst_17 = arith.constant 0.00999999977 : f32
    %22 = vector.broadcast %cst_17 : f32 to vector<8x128xf32>
    %23 = arith.mulf %22, %21 : vector<8x128xf32>
    %24 = arith.maximumf %21, %23 : vector<8x128xf32>
    %c0_18 = arith.constant 0 : index
    %c0_19 = arith.constant 0 : index
    %25 = vector.load %arg8[%c0_18, %c0_19] : memref<128x128xf32, #tpu.memory_space<vmem>>, vector<128x128xf32>
    %c0_20 = arith.constant 0 : index
    %c0_21 = arith.constant 0 : index
    %26 = vector.load %arg9[%c0_20, %c0_21] : memref<1x128xf32, #tpu.memory_space<vmem>>, vector<1x128xf32>
    %cst_22 = arith.constant dense<0.000000e+00> : vector<8x128xf32>
    %27 = tpu.matmul %24, %25, %cst_22 {dimension_numbers = #tpu.dot_dimension_numbers<[1], [0], [0], [1], [0, 0, 1, 1], [], []>} : vector<8x128xf32>, vector<128x128xf32>, vector<8x128xf32> -> vector<8x128xf32>
    %28 = vector.broadcast %26 : vector<1x128xf32> to vector<8x128xf32>
    %29 = arith.addf %27, %28 : vector<8x128xf32>
    %cst_23 = arith.constant 0.00999999977 : f32
    %30 = vector.broadcast %cst_23 : f32 to vector<8x128xf32>
    %31 = arith.mulf %30, %29 : vector<8x128xf32>
    %32 = arith.maximumf %29, %31 : vector<8x128xf32>
    %c0_24 = arith.constant 0 : index
    %c0_25 = arith.constant 0 : index
    %33 = vector.load %arg10[%c0_24, %c0_25] : memref<128x128xf32, #tpu.memory_space<vmem>>, vector<128x128xf32>
    %c0_26 = arith.constant 0 : index
    %c0_27 = arith.constant 0 : index
    %34 = vector.load %arg11[%c0_26, %c0_27] : memref<1x128xf32, #tpu.memory_space<vmem>>, vector<1x128xf32>
    %cst_28 = arith.constant dense<0.000000e+00> : vector<8x128xf32>
    %35 = tpu.matmul %32, %33, %cst_28 {dimension_numbers = #tpu.dot_dimension_numbers<[1], [0], [0], [1], [0, 0, 1, 1], [], []>} : vector<8x128xf32>, vector<128x128xf32>, vector<8x128xf32> -> vector<8x128xf32>
    %36 = vector.broadcast %34 : vector<1x128xf32> to vector<8x128xf32>
    %37 = arith.addf %35, %36 : vector<8x128xf32>
    %cst_29 = arith.constant 0.00999999977 : f32
    %38 = vector.broadcast %cst_29 : f32 to vector<8x128xf32>
    %39 = arith.mulf %38, %37 : vector<8x128xf32>
    %40 = arith.maximumf %37, %39 : vector<8x128xf32>
    %c0_30 = arith.constant 0 : index
    %c0_31 = arith.constant 0 : index
    %41 = vector.load %arg12[%c0_30, %c0_31] : memref<128x128xf32, #tpu.memory_space<vmem>>, vector<128x128xf32>
    %c0_32 = arith.constant 0 : index
    %c0_33 = arith.constant 0 : index
    %42 = vector.load %arg13[%c0_32, %c0_33] : memref<1x128xf32, #tpu.memory_space<vmem>>, vector<1x128xf32>
    %cst_34 = arith.constant dense<0.000000e+00> : vector<8x128xf32>
    %43 = tpu.matmul %40, %41, %cst_34 {dimension_numbers = #tpu.dot_dimension_numbers<[1], [0], [0], [1], [0, 0, 1, 1], [], []>} : vector<8x128xf32>, vector<128x128xf32>, vector<8x128xf32> -> vector<8x128xf32>
    %44 = vector.broadcast %42 : vector<1x128xf32> to vector<8x128xf32>
    %45 = arith.addf %43, %44 : vector<8x128xf32>
    %c0_35 = arith.constant 0 : index
    %c0_36 = arith.constant 0 : index
    %46 = vector.load %arg14[%c0_35, %c0_36] : memref<8x128xf32, #tpu.memory_space<vmem>>, vector<8x128xf32>
    tpu.vector_store %arg14[%c0_35, %c0_36], %45 {strides = array<i32>} : memref<8x128xf32, #tpu.memory_space<vmem>>, vector<8x128xf32>,
    return
  }
  func.func @transform_0(%arg0: i32) -> (i32, i32) {
    %c0_i32 = arith.constant 0 : i32
    %c0_i32_0 = arith.constant 0 : i32
    return %arg0, %c0_i32 : i32, i32
  }
  func.func @transform_1(%arg0: i32) -> (i32, i32) {
    %c0_i32 = arith.constant 0 : i32
    %c0_i32_0 = arith.constant 0 : i32
    %c0_i32_1 = arith.constant 0 : i32
    return %c0_i32, %c0_i32_0 : i32, i32
  }
  func.func @transform_2(%arg0: i32) -> (i32, i32) {
    %c0_i32 = arith.constant 0 : i32
    %c0_i32_0 = arith.constant 0 : i32
    %c0_i32_1 = arith.constant 0 : i32
    return %c0_i32, %c0_i32_0 : i32, i32
  }
  func.func @transform_3(%arg0: i32) -> (i32, i32) {
    %c0_i32 = arith.constant 0 : i32
    %c0_i32_0 = arith.constant 0 : i32
    %c0_i32_1 = arith.constant 0 : i32
    return %c0_i32, %c0_i32_0 : i32, i32
  }
  func.func @transform_4(%arg0: i32) -> (i32, i32) {
    %c0_i32 = arith.constant 0 : i32
    %c0_i32_0 = arith.constant 0 : i32
    %c0_i32_1 = arith.constant 0 : i32
    return %c0_i32, %c0_i32_0 : i32, i32
  }
  func.func @transform_5(%arg0: i32) -> (i32, i32) {
    %c0_i32 = arith.constant 0 : i32
    %c0_i32_0 = arith.constant 0 : i32
    %c0_i32_1 = arith.constant 0 : i32
    return %c0_i32, %c0_i32_0 : i32, i32
  }
  func.func @transform_6(%arg0: i32) -> (i32, i32) {
    %c0_i32 = arith.constant 0 : i32
    %c0_i32_0 = arith.constant 0 : i32
    %c0_i32_1 = arith.constant 0 : i32
    return %c0_i32, %c0_i32_0 : i32, i32
  }
  func.func @transform_7(%arg0: i32) -> (i32, i32) {
    %c0_i32 = arith.constant 0 : i32
    %c0_i32_0 = arith.constant 0 : i32
    %c0_i32_1 = arith.constant 0 : i32
    return %c0_i32, %c0_i32_0 : i32, i32
  }
  func.func @transform_8(%arg0: i32) -> (i32, i32) {
    %c0_i32 = arith.constant 0 : i32
    %c0_i32_0 = arith.constant 0 : i32
    %c0_i32_1 = arith.constant 0 : i32
    return %c0_i32, %c0_i32_0 : i32, i32
  }
  func.func @transform_9(%arg0: i32) -> (i32, i32) {
    %c0_i32 = arith.constant 0 : i32
    %c0_i32_0 = arith.constant 0 : i32
    %c0_i32_1 = arith.constant 0 : i32
    return %c0_i32, %c0_i32_0 : i32, i32
  }
  func.func @transform_10(%arg0: i32) -> (i32, i32) {
    %c0_i32 = arith.constant 0 : i32
    %c0_i32_0 = arith.constant 0 : i32
    %c0_i32_1 = arith.constant 0 : i32
    return %c0_i32, %c0_i32_0 : i32, i32
  }
  func.func @transform_11(%arg0: i32) -> (i32, i32) {
    %c0_i32 = arith.constant 0 : i32
    %c0_i32_0 = arith.constant 0 : i32
    %c0_i32_1 = arith.constant 0 : i32
    return %c0_i32, %c0_i32_0 : i32, i32
  }
  func.func @transform_12(%arg0: i32) -> (i32, i32) {
    %c0_i32 = arith.constant 0 : i32
    %c0_i32_0 = arith.constant 0 : i32
    %c0_i32_1 = arith.constant 0 : i32
    return %c0_i32, %c0_i32_0 : i32, i32
  }
  func.func @transform_13(%arg0: i32) -> (i32, i32) {
    %c0_i32 = arith.constant 0 : i32
    %c0_i32_0 = arith.constant 0 : i32
    return %arg0, %c0_i32 : i32, i32
  }
}

</mosaic_0001>

<llo_original>
// kernel: tpu_custom_call.1
$region0: #{tpu_custom_call.1}
  #allocation0 [shape = 'u32[]', space=smem, size = 0x4, offset = 0x4, fixed_abs, tag = 'smem constant byte address 0x4 - core index']
  #allocation1 [shape = 'u32[144,128]{1,0:T(1,128)}', space=vmem, size = 0x12000, scoped, tag = 'internal scratch']
  %s0 = inlined_call_operand.hbm [shape: f32[8,128], index: 0, kind: input, shape index: {}]
  %s1 = inlined_call_operand.hbm [shape: f32[128,128], index: 1, kind: input, shape index: {}]
  %s2 = inlined_call_operand.vmem [shape: f32[1,128], index: 2, kind: input, shape index: {}]
  %s3 = inlined_call_operand.hbm [shape: f32[128,128], index: 3, kind: input, shape index: {}]
  %s4 = inlined_call_operand.vmem [shape: f32[1,128], index: 4, kind: input, shape index: {}]
  %s5 = inlined_call_operand.hbm [shape: f32[128,128], index: 5, kind: input, shape index: {}]
  %s6 = inlined_call_operand.vmem [shape: f32[1,128], index: 6, kind: input, shape index: {}]
  %s7 = inlined_call_operand.hbm [shape: f32[128,128], index: 7, kind: input, shape index: {}]
  %s8 = inlined_call_operand.vmem [shape: f32[1,128], index: 8, kind: input, shape index: {}]
  %s9 = inlined_call_operand.hbm [shape: f32[128,128], index: 9, kind: input, shape index: {}]
  %s10 = inlined_call_operand.vmem [shape: f32[1,128], index: 10, kind: input, shape index: {}]
  %s11 = inlined_call_operand.hbm [shape: f32[128,128], index: 11, kind: input, shape index: {}]
  %s12 = inlined_call_operand.vmem [shape: f32[1,128], index: 12, kind: input, shape index: {}]
  %s13 = inlined_call_operand.hbm [shape: f32[8,128], index: 13, kind: output, shape index: {}]
  %s14 = sld [smem:[#allocation0]]
  $region90: #{tpu_custom_call.1} parent=0
    _
  %s16 = ssub.s32 1, %s14
  %s17 = scalar_select 0, %s16, %s14
  $region1: #{tpu_custom_call.1} parent=0
    #allocation2 [shape = 'u8[4096]{0}', space=vmem, size = 0x1000, scoped, tag = 'input window, operand 0, single buffered']
    #allocation3 [shape = 's32[1]{0}', space=sflag, size = 0x4, scoped, tag = 'scoped memory for tpu_custom_call.1']
    #allocation4 [shape = 's32[1]{0}', space=sflag, size = 0x4, scoped, tag = 'scoped memory for tpu_custom_call.1']
    #allocation5 [shape = 'u8[65536]{0}', space=vmem, size = 0x10000, scoped, tag = 'input window, operand 1, single buffered']
    #allocation6 [shape = 's32[1]{0}', space=sflag, size = 0x4, scoped, tag = 'scoped memory for tpu_custom_call.1']
    #allocation7 [shape = 'u8[65536]{0}', space=vmem, size = 0x10000, scoped, tag = 'input window, operand 3, single buffered']
    #allocation8 [shape = 'u8[65536]{0}', space=vmem, size = 0x10000, scoped, tag = 'input window, operand 5, single buffered']
    #allocation9 [shape = 's32[1]{0}', space=sflag, size = 0x4, scoped, tag = 'scoped memory for tpu_custom_call.1']
    #allocation10 [shape = 'u8[65536]{0}', space=vmem, size = 0x10000, scoped, tag = 'input window, operand 7, single buffered']
    #allocation11 [shape = 'u8[65536]{0}', space=vmem, size = 0x10000, scoped, tag = 'input window, operand 9, single buffered']
    #allocation12 [shape = 's32[1]{0}', space=sflag, size = 0x4, scoped, tag = 'scoped memory for tpu_custom_call.1']
    #allocation13 [shape = 'u8[65536]{0}', space=vmem, size = 0x10000, scoped, tag = 'input window, operand 11, single buffered']
    #allocation14 [shape = 'u8[4096]{0}', space=vmem, size = 0x1000, scoped, tag = 'output window, operand 0, single buffered']
    %18 = vsyncpa [#allocation3], 0
    %19 = vsyncpa [#allocation6], 0
    %20 = vsyncpa [#allocation9], 0
    %21 = vsyncpa [#allocation12], 0
    %22 = vsyncpa [#allocation4], 0
    // Predicated region
    $region2: #{tpu_custom_call.1} parent=1 // pred_check
      _
    $region3: #{tpu_custom_call.1} parent=1 // pred_check_branch
      %24 = sbr.rel (0) target = $region5
    $region4: #{tpu_custom_call.1} parent=1 // pred_region
      %s26 = ssub.s32 128, 128
      %27 = vsyncadd [#allocation3], %s26
      %s29 = sshll.u32 [#allocation2], 4
      %s30 = int_to_ptr.vmem [resolvable:$true] %s29
      %32 = dma.hbm_to_vmem [thread:$0]  %s0, 128, %s30, [#allocation3]
    $region5: #{tpu_custom_call.1} parent=1 // pred_fallthru
      _
    // Predicated region
    $region6: #{tpu_custom_call.1} parent=1 // pred_check
      _
    $region7: #{tpu_custom_call.1} parent=1 // pred_check_branch
      %34 = sbr.rel (0) target = $region9
    $region8: #{tpu_custom_call.1} parent=1 // pred_region
      %s36 = ssub.s32 2048, 2048
      %37 = vsyncadd [#allocation6], %s36
      %s38 = sshll.u32 [#allocation5], 4
      %s39 = int_to_ptr.vmem [resolvable:$true] %s38
      %44 = dma.hbm_to_vmem [thread:$0]  %s1, 2048, %s39, [#allocation6], 128, 128, 8
    $region9: #{tpu_custom_call.1} parent=1 // pred_fallthru
      _
    // Predicated region
    $region10: #{tpu_custom_call.1} parent=1 // pred_check
      _
    $region11: #{tpu_custom_call.1} parent=1 // pred_check_branch
      %46 = sbr.rel (0) target = $region13
    $region12: #{tpu_custom_call.1} parent=1 // pred_region
      _
    $region13: #{tpu_custom_call.1} parent=1 // pred_fallthru
      _
    // Predicated region
    $region14: #{tpu_custom_call.1} parent=1 // pred_check
      _
    $region15: #{tpu_custom_call.1} parent=1 // pred_check_branch
      %48 = sbr.rel (0) target = $region17
    $region16: #{tpu_custom_call.1} parent=1 // pred_region
      %s50 = ssub.s32 2048, 2048
      %51 = vsyncadd [#allocation6], %s50
      %s52 = sshll.u32 [#allocation7], 4
      %s53 = int_to_ptr.vmem [resolvable:$true] %s52
      %58 = dma.hbm_to_vmem [thread:$0]  %s3, 2048, %s53, [#allocation6], 128, 128, 8
    $region17: #{tpu_custom_call.1} parent=1 // pred_fallthru
      _
    // Predicated region
    $region18: #{tpu_custom_call.1} parent=1 // pred_check
      _
    $region19: #{tpu_custom_call.1} parent=1 // pred_check_branch
      %60 = sbr.rel (0) target = $region21
    $region20: #{tpu_custom_call.1} parent=1 // pred_region
      _
    $region21: #{tpu_custom_call.1} parent=1 // pred_fallthru
      _
    // Predicated region
    $region22: #{tpu_custom_call.1} parent=1 // pred_check
      _
    $region23: #{tpu_custom_call.1} parent=1 // pred_check_branch
      %62 = sbr.rel (0) target = $region25
    $region24: #{tpu_custom_call.1} parent=1 // pred_region
      %s64 = ssub.s32 2048, 2048
      %65 = vsyncadd [#allocation9], %s64
      %s66 = sshll.u32 [#allocation8], 4
      %s67 = int_to_ptr.vmem [resolvable:$true] %s66
      %72 = dma.hbm_to_vmem [thread:$0]  %s5, 2048, %s67, [#allocation9], 128, 128, 8
    $region25: #{tpu_custom_call.1} parent=1 // pred_fallthru
      _
    // Predicated region
    $region26: #{tpu_custom_call.1} parent=1 // pred_check
      _
    $region27: #{tpu_custom_call.1} parent=1 // pred_check_branch
      %74 = sbr.rel (0) target = $region29
    $region28: #{tpu_custom_call.1} parent=1 // pred_region
      _
    $region29: #{tpu_custom_call.1} parent=1 // pred_fallthru
      _
    // Predicated region
    $region30: #{tpu_custom_call.1} parent=1 // pred_check
      _
    $region31: #{tpu_custom_call.1} parent=1 // pred_check_branch
      %76 = sbr.rel (0) target = $region33
    $region32: #{tpu_custom_call.1} parent=1 // pred_region
      %s78 = ssub.s32 2048, 2048
      %79 = vsyncadd [#allocation9], %s78
      %s80 = sshll.u32 [#allocation10], 4
      %s81 = int_to_ptr.vmem [resolvable:$true] %s80
      %86 = dma.hbm_to_vmem [thread:$0]  %s7, 2048, %s81, [#allocation9], 128, 128, 8
    $region33: #{tpu_custom_call.1} parent=1 // pred_fallthru
      _
    // Predicated region
    $region34: #{tpu_custom_call.1} parent=1 // pred_check
      _
    $region35: #{tpu_custom_call.1} parent=1 // pred_check_branch
      %88 = sbr.rel (0) target = $region37
    $region36: #{tpu_custom_call.1} parent=1 // pred_region
      _
    $region37: #{tpu_custom_call.1} parent=1 // pred_fallthru
      _
    // Predicated region
    $region38: #{tpu_custom_call.1} parent=1 // pred_check
      _
    $region39: #{tpu_custom_call.1} parent=1 // pred_check_branch
      %90 = sbr.rel (0) target = $region41
    $region40: #{tpu_custom_call.1} parent=1 // pred_region
      %s92 = ssub.s32 2048, 2048
      %93 = vsyncadd [#allocation12], %s92
      %s94 = sshll.u32 [#allocation11], 4
      %s95 = int_to_ptr.vmem [resolvable:$true] %s94
      %100 = dma.hbm_to_vmem [thread:$0]  %s9, 2048, %s95, [#allocation12], 128, 128, 8
    $region41: #{tpu_custom_call.1} parent=1 // pred_fallthru
      _
    // Predicated region
    $region42: #{tpu_custom_call.1} parent=1 // pred_check
      _
    $region43: #{tpu_custom_call.1} parent=1 // pred_check_branch
      %102 = sbr.rel (0) target = $region45
    $region44: #{tpu_custom_call.1} parent=1 // pred_region
      _
    $region45: #{tpu_custom_call.1} parent=1 // pred_fallthru
      _
    // Predicated region
    $region46: #{tpu_custom_call.1} parent=1 // pred_check
      _
    $region47: #{tpu_custom_call.1} parent=1 // pred_check_branch
      %104 = sbr.rel (0) target = $region49
    $region48: #{tpu_custom_call.1} parent=1 // pred_region
      %s106 = ssub.s32 2048, 2048
      %107 = vsyncadd [#allocation12], %s106
      %s108 = sshll.u32 [#allocation13], 4
      %s109 = int_to_ptr.vmem [resolvable:$true] %s108
      %114 = dma.hbm_to_vmem [thread:$0]  %s11, 2048, %s109, [#allocation12], 128, 128, 8
    $region49: #{tpu_custom_call.1} parent=1 // pred_fallthru
      _
    // Predicated region
    $region50: #{tpu_custom_call.1} parent=1 // pred_check
      _
    $region51: #{tpu_custom_call.1} parent=1 // pred_check_branch
      %116 = sbr.rel (0) target = $region53
    $region52: #{tpu_custom_call.1} parent=1 // pred_region
      _
    $region53: #{tpu_custom_call.1} parent=1 // pred_fallthru
      _
    // Predicated region
    $region54: #{tpu_custom_call.1} parent=1 // pred_check
      _
    $region55: #{tpu_custom_call.1} parent=1 // pred_check_branch
      %118 = sbr.rel (0) target = $region57
    $region56: #{tpu_custom_call.1} parent=1 // pred_region
      %119 = dma.done [#allocation3], 128
    $region57: #{tpu_custom_call.1} parent=1 // pred_fallthru
      _
    // Predicated region
    $region58: #{tpu_custom_call.1} parent=1 // pred_check
      _
    $region59: #{tpu_custom_call.1} parent=1 // pred_check_branch
      %121 = sbr.rel (0) target = $region61
    $region60: #{tpu_custom_call.1} parent=1 // pred_region
      %122 = dma.done [#allocation6], 2048
    $region61: #{tpu_custom_call.1} parent=1 // pred_fallthru
      _
    // Predicated region
    $region62: #{tpu_custom_call.1} parent=1 // pred_check
      _
    $region63: #{tpu_custom_call.1} parent=1 // pred_check_branch
      %124 = sbr.rel (0) target = $region65
    $region64: #{tpu_custom_call.1} parent=1 // pred_region
      %125 = dma.done [#allocation6], 2048
    $region65: #{tpu_custom_call.1} parent=1 // pred_fallthru
      _
    // Predicated region
    $region66: #{tpu_custom_call.1} parent=1 // pred_check
      _
    $region67: #{tpu_custom_call.1} parent=1 // pred_check_branch
      %127 = sbr.rel (0) target = $region69
    $region68: #{tpu_custom_call.1} parent=1 // pred_region
      %128 = dma.done [#allocation9], 2048
    $region69: #{tpu_custom_call.1} parent=1 // pred_fallthru
      _
    // Predicated region
    $region70: #{tpu_custom_call.1} parent=1 // pred_check
      _
    $region71: #{tpu_custom_call.1} parent=1 // pred_check_branch
      %130 = sbr.rel (0) target = $region73
    $region72: #{tpu_custom_call.1} parent=1 // pred_region
      %131 = dma.done [#allocation9], 2048
    $region73: #{tpu_custom_call.1} parent=1 // pred_fallthru
      _
    // Predicated region
    $region74: #{tpu_custom_call.1} parent=1 // pred_check
      _
    $region75: #{tpu_custom_call.1} parent=1 // pred_check_branch
      %133 = sbr.rel (0) target = $region77
    $region76: #{tpu_custom_call.1} parent=1 // pred_region
      %134 = dma.done [#allocation12], 2048
    $region77: #{tpu_custom_call.1} parent=1 // pred_fallthru
      _
    // Predicated region
    $region78: #{tpu_custom_call.1} parent=1 // pred_check
      _
    $region79: #{tpu_custom_call.1} parent=1 // pred_check_branch
      %136 = sbr.rel (0) target = $region81
    $region80: #{tpu_custom_call.1} parent=1 // pred_region
      %137 = dma.done [#allocation12], 2048
    $region81: #{tpu_custom_call.1} parent=1 // pred_fallthru
      _
    %v138 = vld [vmem:[#allocation2] sm:$0xff]
    %v139 = vld [vmem:[#allocation5] sm:$0xff]
    %v140 = vld [vmem:[#allocation5 + $0x8] sm:$0xff]
    %v141 = vld [vmem:[#allocation5 + $0x10] sm:$0xff]
    %v142 = vld [vmem:[#allocation5 + $0x18] sm:$0xff]
    %v143 = vld [vmem:[#allocation5 + $0x20] sm:$0xff]
    %v144 = vld [vmem:[#allocation5 + $0x28] sm:$0xff]
    %v145 = vld [vmem:[#allocation5 + $0x30] sm:$0xff]
    %v146 = vld [vmem:[#allocation5 + $0x38] sm:$0xff]
    %v147 = vld [vmem:[#allocation5 + $0x40] sm:$0xff]
    %v148 = vld [vmem:[#allocation5 + $0x48] sm:$0xff]
    %v149 = vld [vmem:[#allocation5 + $0x50] sm:$0xff]
    %v150 = vld [vmem:[#allocation5 + $0x58] sm:$0xff]
    %v151 = vld [vmem:[#allocation5 + $0x60] sm:$0xff]
    %v152 = vld [vmem:[#allocation5 + $0x68] sm:$0xff]
    %v153 = vld [vmem:[#allocation5 + $0x70] sm:$0xff]
    %v154 = vld [vmem:[#allocation5 + $0x78] sm:$0xff]
    %v155 = vld [vmem:[%s2] sm:$0x1]
    %v157 = vlaneseq
    %v158 = vshrl.u32 %v157, 7
    %v159 = vsub.s32 0, %v158
    %v160 = vrot.slane %v155, %v159
    %162 = vmatprep.subr.mxu0 0.0
    %163 = vmatpush1.msra.mxu0 %v139
    %164 = vmatprep.subr.mxu0 0.0
    %165 = vmatpush1.msra.mxu0 %v140
    %166 = vmatprep.subr.mxu0 0.0
    %167 = vmatpush1.msra.mxu0 %v141
    %168 = vmatprep.subr.mxu0 0.0
    %169 = vmatpush1.msra.mxu0 %v142
    %170 = vmatprep.subr.mxu0 0.0
    %171 = vmatpush1.msra.mxu0 %v143
    %172 = vmatprep.subr.mxu0 0.0
    %173 = vmatpush1.msra.mxu0 %v144
    %174 = vmatprep.subr.mxu0 0.0
    %175 = vmatpush1.msra.mxu0 %v145
    %176 = vmatprep.subr.mxu0 0.0
    %177 = vmatpush1.msra.mxu0 %v146
    %178 = vmatprep.subr.mxu0 0.0
    %179 = vmatpush1.msra.mxu0 %v147
    %180 = vmatprep.subr.mxu0 0.0
    %181 = vmatpush1.msra.mxu0 %v148
    %182 = vmatprep.subr.mxu0 0.0
    %183 = vmatpush1.msra.mxu0 %v149
    %184 = vmatprep.subr.mxu0 0.0
    %185 = vmatpush1.msra.mxu0 %v150
    %186 = vmatprep.subr.mxu0 0.0
    %187 = vmatpush1.msra.mxu0 %v151
    %188 = vmatprep.subr.mxu0 0.0
    %189 = vmatpush1.msra.mxu0 %v152
    %190 = vmatprep.subr.mxu0 0.0
    %191 = vmatpush1.msra.mxu0 %v153
    %192 = vmatprep.subr.mxu0 0.0
    %193 = vmatpush1.msra.mxu0 %v154
    %194 = vmatprep.subr.mxu0 0.0
    %195 = vmatpush1.msra.mxu0 0.0
    %196 = vmatprep.subr.mxu0 0.0
    %197 = vmatpush1.msra.mxu0 0.0
    %198 = vmatprep.subr.mxu0 0.0
    %199 = vmatpush1.msra.mxu0 0.0
    %200 = vmatprep.subr.mxu0 0.0
    %201 = vmatpush1.msra.mxu0 0.0
    %202 = vmatprep.subr.mxu0 0.0
    %203 = vmatpush1.msra.mxu0 0.0
    %204 = vmatprep.subr.mxu0 0.0
    %205 = vmatpush1.msra.mxu0 0.0
    %206 = vmatprep.subr.mxu0 0.0
    %207 = vmatpush1.msra.mxu0 0.0
    %208 = vmatprep.subr.mxu0 0.0
    %209 = vmatpush1.msra.mxu0 0.0
    %210 = vmatprep.subr.mxu0 0.0
    %211 = vmatpush1.msra.mxu0 0.0
    %212 = vmatprep.subr.mxu0 0.0
    %213 = vmatpush1.msra.mxu0 0.0
    %214 = vmatprep.subr.mxu0 0.0
    %215 = vmatpush1.msra.mxu0 0.0
    %216 = vmatprep.subr.mxu0 0.0
    %217 = vmatpush1.msra.mxu0 0.0
    %218 = vmatprep.subr.mxu0 0.0
    %219 = vmatpush1.msra.mxu0 0.0
    %220 = vmatprep.subr.mxu0 0.0
    %221 = vmatpush1.msra.mxu0 0.0
    %222 = vmatprep.subr.mxu0 0.0
    %223 = vmatpush1.msra.mxu0 0.0
    %224 = vmatprep.subr.mxu0 0.0
    %225 = vmatpush1.msra.mxu0 0.0
    %226 = vmatprep.mubr.f32.mxu0 0.0
    %227 = vmatmul.mubr.f32.gmra.mrb[0].mxu0 %v138
    %v228 = vpop.f32.mrb[0].mxu0
    %v229 = vadd.f32 %v160, %v228
    %v230 = vpop.f32.mrb[0].mxu0
    %231 = vdwg.mxu0
    %v232 = vmul.f32 %v229, 0.01
    %v233 = vmax.f32 %v229, %v232
    %v234 = vld [vmem:[#allocation7] sm:$0xff]
    %v235 = vld [vmem:[#allocation7 + $0x8] sm:$0xff]
    %v236 = vld [vmem:[#allocation7 + $0x10] sm:$0xff]
    %v237 = vld [vmem:[#allocation7 + $0x18] sm:$0xff]
    %v238 = vld [vmem:[#allocation7 + $0x20] sm:$0xff]
    %v239 = vld [vmem:[#allocation7 + $0x28] sm:$0xff]
    %v240 = vld [vmem:[#allocation7 + $0x30] sm:$0xff]
    %v241 = vld [vmem:[#allocation7 + $0x38] sm:$0xff]
    %v242 = vld [vmem:[#allocation7 + $0x40] sm:$0xff]
    %v243 = vld [vmem:[#allocation7 + $0x48] sm:$0xff]
    %v244 = vld [vmem:[#allocation7 + $0x50] sm:$0xff]
    %v245 = vld [vmem:[#allocation7 + $0x58] sm:$0xff]
    %v246 = vld [vmem:[#allocation7 + $0x60] sm:$0xff]
    %v247 = vld [vmem:[#allocation7 + $0x68] sm:$0xff]
    %v248 = vld [vmem:[#allocation7 + $0x70] sm:$0xff]
    %v249 = vld [vmem:[#allocation7 + $0x78] sm:$0xff]
    %v250 = vld [vmem:[%s4] sm:$0x1]
    %v252 = vlaneseq
    %v253 = vshrl.u32 %v252, 7
    %v254 = vsub.s32 0, %v253
    %v255 = vrot.slane %v250, %v254
    %257 = vmatprep.subr.mxu0 0.0
    %258 = vmatpush1.msra.mxu0 %v234
    %259 = vmatprep.subr.mxu0 0.0
    %260 = vmatpush1.msra.mxu0 %v235
    %261 = vmatprep.subr.mxu0 0.0
    %262 = vmatpush1.msra.mxu0 %v236
    %263 = vmatprep.subr.mxu0 0.0
    %264 = vmatpush1.msra.mxu0 %v237
    %265 = vmatprep.subr.mxu0 0.0
    %266 = vmatpush1.msra.mxu0 %v238
    %267 = vmatprep.subr.mxu0 0.0
    %268 = vmatpush1.msra.mxu0 %v239
    %269 = vmatprep.subr.mxu0 0.0
    %270 = vmatpush1.msra.mxu0 %v240
    %271 = vmatprep.subr.mxu0 0.0
    %272 = vmatpush1.msra.mxu0 %v241
    %273 = vmatprep.subr.mxu0 0.0
    %274 = vmatpush1.msra.mxu0 %v242
    %275 = vmatprep.subr.mxu0 0.0
    %276 = vmatpush1.msra.mxu0 %v243
    %277 = vmatprep.subr.mxu0 0.0
    %278 = vmatpush1.msra.mxu0 %v244
    %279 = vmatprep.subr.mxu0 0.0
    %280 = vmatpush1.msra.mxu0 %v245
    %281 = vmatprep.subr.mxu0 0.0
    %282 = vmatpush1.msra.mxu0 %v246
    %283 = vmatprep.subr.mxu0 0.0
    %284 = vmatpush1.msra.mxu0 %v247
    %285 = vmatprep.subr.mxu0 0.0
    %286 = vmatpush1.msra.mxu0 %v248
    %287 = vmatprep.subr.mxu0 0.0
    %288 = vmatpush1.msra.mxu0 %v249
    %289 = vmatprep.subr.mxu0 0.0
    %290 = vmatpush1.msra.mxu0 0.0
    %291 = vmatprep.subr.mxu0 0.0
    %292 = vmatpush1.msra.mxu0 0.0
    %293 = vmatprep.subr.mxu0 0.0
    %294 = vmatpush1.msra.mxu0 0.0
    %295 = vmatprep.subr.mxu0 0.0
    %296 = vmatpush1.msra.mxu0 0.0
    %297 = vmatprep.subr.mxu0 0.0
    %298 = vmatpush1.msra.mxu0 0.0
    %299 = vmatprep.subr.mxu0 0.0
    %300 = vmatpush1.msra.mxu0 0.0
    %301 = vmatprep.subr.mxu0 0.0
    %302 = vmatpush1.msra.mxu0 0.0
    %303 = vmatprep.subr.mxu0 0.0
    %304 = vmatpush1.msra.mxu0 0.0
    %305 = vmatprep.subr.mxu0 0.0
    %306 = vmatpush1.msra.mxu0 0.0
    %307 = vmatprep.subr.mxu0 0.0
    %308 = vmatpush1.msra.mxu0 0.0
    %309 = vmatprep.subr.mxu0 0.0
    %310 = vmatpush1.msra.mxu0 0.0
    %311 = vmatprep.subr.mxu0 0.0
    %312 = vmatpush1.msra.mxu0 0.0
    %313 = vmatprep.subr.mxu0 0.0
    %314 = vmatpush1.msra.mxu0 0.0
    %315 = vmatprep.subr.mxu0 0.0
    %316 = vmatpush1.msra.mxu0 0.0
    %317 = vmatprep.subr.mxu0 0.0
    %318 = vmatpush1.msra.mxu0 0.0
    %319 = vmatprep.subr.mxu0 0.0
    %320 = vmatpush1.msra.mxu0 0.0
    %321 = vmatprep.mubr.f32.mxu0 0.0
    %322 = vmatmul.mubr.f32.gmra.mrb[0].mxu0 %v233
    %v323 = vpop.f32.mrb[0].mxu0
    %v324 = vadd.f32 %v255, %v323
    %v325 = vpop.f32.mrb[0].mxu0
    %326 = vdwg.mxu0
    %v327 = vmul.f32 %v324, 0.01
    %v328 = vmax.f32 %v324, %v327
    %v329 = vld [vmem:[#allocation8] sm:$0xff]
    %v330 = vld [vmem:[#allocation8 + $0x8] sm:$0xff]
    %v331 = vld [vmem:[#allocation8 + $0x10] sm:$0xff]
    %v332 = vld [vmem:[#allocation8 + $0x18] sm:$0xff]
    %v333 = vld [vmem:[#allocation8 + $0x20] sm:$0xff]
    %v334 = vld [vmem:[#allocation8 + $0x28] sm:$0xff]
    %v335 = vld [vmem:[#allocation8 + $0x30] sm:$0xff]
    %v336 = vld [vmem:[#allocation8 + $0x38] sm:$0xff]
    %v337 = vld [vmem:[#allocation8 + $0x40] sm:$0xff]
    %v338 = vld [vmem:[#allocation8 + $0x48] sm:$0xff]
    %v339 = vld [vmem:[#allocation8 + $0x50] sm:$0xff]
    %v340 = vld [vmem:[#allocation8 + $0x58] sm:$0xff]
    %v341 = vld [vmem:[#allocation8 + $0x60] sm:$0xff]
    %v342 = vld [vmem:[#allocation8 + $0x68] sm:$0xff]
    %v343 = vld [vmem:[#allocation8 + $0x70] sm:$0xff]
    %v344 = vld [vmem:[#allocation8 + $0x78] sm:$0xff]
    %v345 = vld [vmem:[%s6] sm:$0x1]
    %v347 = vlaneseq
    %v348 = vshrl.u32 %v347, 7
    %v349 = vsub.s32 0, %v348
    %v350 = vrot.slane %v345, %v349
    %352 = vmatprep.subr.mxu0 0.0
    %353 = vmatpush1.msra.mxu0 %v329
    %354 = vmatprep.subr.mxu0 0.0
    %355 = vmatpush1.msra.mxu0 %v330
    %356 = vmatprep.subr.mxu0 0.0
    %357 = vmatpush1.msra.mxu0 %v331
    %358 = vmatprep.subr.mxu0 0.0
    %359 = vmatpush1.msra.mxu0 %v332
    %360 = vmatprep.subr.mxu0 0.0
    %361 = vmatpush1.msra.mxu0 %v333
    %362 = vmatprep.subr.mxu0 0.0
    %363 = vmatpush1.msra.mxu0 %v334
    %364 = vmatprep.subr.mxu0 0.0
    %365 = vmatpush1.msra.mxu0 %v335
    %366 = vmatprep.subr.mxu0 0.0
    %367 = vmatpush1.msra.mxu0 %v336
    %368 = vmatprep.subr.mxu0 0.0
    %369 = vmatpush1.msra.mxu0 %v337
    %370 = vmatprep.subr.mxu0 0.0
    %371 = vmatpush1.msra.mxu0 %v338
    %372 = vmatprep.subr.mxu0 0.0
    %373 = vmatpush1.msra.mxu0 %v339
    %374 = vmatprep.subr.mxu0 0.0
    %375 = vmatpush1.msra.mxu0 %v340
    %376 = vmatprep.subr.mxu0 0.0
    %377 = vmatpush1.msra.mxu0 %v341
    %378 = vmatprep.subr.mxu0 0.0
    %379 = vmatpush1.msra.mxu0 %v342
    %380 = vmatprep.subr.mxu0 0.0
    %381 = vmatpush1.msra.mxu0 %v343
    %382 = vmatprep.subr.mxu0 0.0
    %383 = vmatpush1.msra.mxu0 %v344
    %384 = vmatprep.subr.mxu0 0.0
    %385 = vmatpush1.msra.mxu0 0.0
    %386 = vmatprep.subr.mxu0 0.0
    %387 = vmatpush1.msra.mxu0 0.0
    %388 = vmatprep.subr.mxu0 0.0
    %389 = vmatpush1.msra.mxu0 0.0
    %390 = vmatprep.subr.mxu0 0.0
    %391 = vmatpush1.msra.mxu0 0.0
    %392 = vmatprep.subr.mxu0 0.0
    %393 = vmatpush1.msra.mxu0 0.0
    %394 = vmatprep.subr.mxu0 0.0
    %395 = vmatpush1.msra.mxu0 0.0
    %396 = vmatprep.subr.mxu0 0.0
    %397 = vmatpush1.msra.mxu0 0.0
    %398 = vmatprep.subr.mxu0 0.0
    %399 = vmatpush1.msra.mxu0 0.0
    %400 = vmatprep.subr.mxu0 0.0
    %401 = vmatpush1.msra.mxu0 0.0
    %402 = vmatprep.subr.mxu0 0.0
    %403 = vmatpush1.msra.mxu0 0.0
    %404 = vmatprep.subr.mxu0 0.0
    %405 = vmatpush1.msra.mxu0 0.0
    %406 = vmatprep.subr.mxu0 0.0
    %407 = vmatpush1.msra.mxu0 0.0
    %408 = vmatprep.subr.mxu0 0.0
    %409 = vmatpush1.msra.mxu0 0.0
    %410 = vmatprep.subr.mxu0 0.0
    %411 = vmatpush1.msra.mxu0 0.0
    %412 = vmatprep.subr.mxu0 0.0
    %413 = vmatpush1.msra.mxu0 0.0
    %414 = vmatprep.subr.mxu0 0.0
    %415 = vmatpush1.msra.mxu0 0.0
    %416 = vmatprep.mubr.f32.mxu0 0.0
    %417 = vmatmul.mubr.f32.gmra.mrb[0].mxu0 %v328
    %v418 = vpop.f32.mrb[0].mxu0
    %v419 = vadd.f32 %v350, %v418
    %v420 = vpop.f32.mrb[0].mxu0
    %421 = vdwg.mxu0
    %v422 = vmul.f32 %v419, 0.01
    %v423 = vmax.f32 %v419, %v422
    %v424 = vld [vmem:[#allocation10] sm:$0xff]
    %v425 = vld [vmem:[#allocation10 + $0x8] sm:$0xff]
    %v426 = vld [vmem:[#allocation10 + $0x10] sm:$0xff]
    %v427 = vld [vmem:[#allocation10 + $0x18] sm:$0xff]
    %v428 = vld [vmem:[#allocation10 + $0x20] sm:$0xff]
    %v429 = vld [vmem:[#allocation10 + $0x28] sm:$0xff]
    %v430 = vld [vmem:[#allocation10 + $0x30] sm:$0xff]
    %v431 = vld [vmem:[#allocation10 + $0x38] sm:$0xff]
    %v432 = vld [vmem:[#allocation10 + $0x40] sm:$0xff]
    %v433 = vld [vmem:[#allocation10 + $0x48] sm:$0xff]
    %v434 = vld [vmem:[#allocation10 + $0x50] sm:$0xff]
    %v435 = vld [vmem:[#allocation10 + $0x58] sm:$0xff]
    %v436 = vld [vmem:[#allocation10 + $0x60] sm:$0xff]
    %v437 = vld [vmem:[#allocation10 + $0x68] sm:$0xff]
    %v438 = vld [vmem:[#allocation10 + $0x70] sm:$0xff]
    %v439 = vld [vmem:[#allocation10 + $0x78] sm:$0xff]
    %v440 = vld [vmem:[%s8] sm:$0x1]
    %v442 = vlaneseq
    %v443 = vshrl.u32 %v442, 7
    %v444 = vsub.s32 0, %v443
    %v445 = vrot.slane %v440, %v444
    %447 = vmatprep.subr.mxu0 0.0
    %448 = vmatpush1.msra.mxu0 %v424
    %449 = vmatprep.subr.mxu0 0.0
    %450 = vmatpush1.msra.mxu0 %v425
    %451 = vmatprep.subr.mxu0 0.0
    %452 = vmatpush1.msra.mxu0 %v426
    %453 = vmatprep.subr.mxu0 0.0
    %454 = vmatpush1.msra.mxu0 %v427
    %455 = vmatprep.subr.mxu0 0.0
    %456 = vmatpush1.msra.mxu0 %v428
    %457 = vmatprep.subr.mxu0 0.0
    %458 = vmatpush1.msra.mxu0 %v429
    %459 = vmatprep.subr.mxu0 0.0
    %460 = vmatpush1.msra.mxu0 %v430
    %461 = vmatprep.subr.mxu0 0.0
    %462 = vmatpush1.msra.mxu0 %v431
    %463 = vmatprep.subr.mxu0 0.0
    %464 = vmatpush1.msra.mxu0 %v432
    %465 = vmatprep.subr.mxu0 0.0
    %466 = vmatpush1.msra.mxu0 %v433
    %467 = vmatprep.subr.mxu0 0.0
    %468 = vmatpush1.msra.mxu0 %v434
    %469 = vmatprep.subr.mxu0 0.0
    %470 = vmatpush1.msra.mxu0 %v435
    %471 = vmatprep.subr.mxu0 0.0
    %472 = vmatpush1.msra.mxu0 %v436
    %473 = vmatprep.subr.mxu0 0.0
    %474 = vmatpush1.msra.mxu0 %v437
    %475 = vmatprep.subr.mxu0 0.0
    %476 = vmatpush1.msra.mxu0 %v438
    %477 = vmatprep.subr.mxu0 0.0
    %478 = vmatpush1.msra.mxu0 %v439
    %479 = vmatprep.subr.mxu0 0.0
    %480 = vmatpush1.msra.mxu0 0.0
    %481 = vmatprep.subr.mxu0 0.0
    %482 = vmatpush1.msra.mxu0 0.0
    %483 = vmatprep.subr.mxu0 0.0
    %484 = vmatpush1.msra.mxu0 0.0
    %485 = vmatprep.subr.mxu0 0.0
    %486 = vmatpush1.msra.mxu0 0.0
    %487 = vmatprep.subr.mxu0 0.0
    %488 = vmatpush1.msra.mxu0 0.0
    %489 = vmatprep.subr.mxu0 0.0
    %490 = vmatpush1.msra.mxu0 0.0
    %491 = vmatprep.subr.mxu0 0.0
    %492 = vmatpush1.msra.mxu0 0.0
    %493 = vmatprep.subr.mxu0 0.0
    %494 = vmatpush1.msra.mxu0 0.0
    %495 = vmatprep.subr.mxu0 0.0
    %496 = vmatpush1.msra.mxu0 0.0
    %497 = vmatprep.subr.mxu0 0.0
    %498 = vmatpush1.msra.mxu0 0.0
    %499 = vmatprep.subr.mxu0 0.0
    %500 = vmatpush1.msra.mxu0 0.0
    %501 = vmatprep.subr.mxu0 0.0
    %502 = vmatpush1.msra.mxu0 0.0
    %503 = vmatprep.subr.mxu0 0.0
    %504 = vmatpush1.msra.mxu0 0.0
    %505 = vmatprep.subr.mxu0 0.0
    %506 = vmatpush1.msra.mxu0 0.0
    %507 = vmatprep.subr.mxu0 0.0
    %508 = vmatpush1.msra.mxu0 0.0
    %509 = vmatprep.subr.mxu0 0.0
    %510 = vmatpush1.msra.mxu0 0.0
    %511 = vmatprep.mubr.f32.mxu0 0.0
    %512 = vmatmul.mubr.f32.gmra.mrb[0].mxu0 %v423
    %v513 = vpop.f32.mrb[0].mxu0
    %v514 = vadd.f32 %v445, %v513
    %v515 = vpop.f32.mrb[0].mxu0
    %516 = vdwg.mxu0
    %v517 = vmul.f32 %v514, 0.01
    %v518 = vmax.f32 %v514, %v517
    %v519 = vld [vmem:[#allocation11] sm:$0xff]
    %v520 = vld [vmem:[#allocation11 + $0x8] sm:$0xff]
    %v521 = vld [vmem:[#allocation11 + $0x10] sm:$0xff]
    %v522 = vld [vmem:[#allocation11 + $0x18] sm:$0xff]
    %v523 = vld [vmem:[#allocation11 + $0x20] sm:$0xff]
    %v524 = vld [vmem:[#allocation11 + $0x28] sm:$0xff]
    %v525 = vld [vmem:[#allocation11 + $0x30] sm:$0xff]
    %v526 = vld [vmem:[#allocation11 + $0x38] sm:$0xff]
    %v527 = vld [vmem:[#allocation11 + $0x40] sm:$0xff]
    %v528 = vld [vmem:[#allocation11 + $0x48] sm:$0xff]
    %v529 = vld [vmem:[#allocation11 + $0x50] sm:$0xff]
    %v530 = vld [vmem:[#allocation11 + $0x58] sm:$0xff]
    %v531 = vld [vmem:[#allocation11 + $0x60] sm:$0xff]
    %v532 = vld [vmem:[#allocation11 + $0x68] sm:$0xff]
    %v533 = vld [vmem:[#allocation11 + $0x70] sm:$0xff]
    %v534 = vld [vmem:[#allocation11 + $0x78] sm:$0xff]
    %v535 = vld [vmem:[%s10] sm:$0x1]
    %v537 = vlaneseq
    %v538 = vshrl.u32 %v537, 7
    %v539 = vsub.s32 0, %v538
    %v540 = vrot.slane %v535, %v539
    %542 = vmatprep.subr.mxu0 0.0
    %543 = vmatpush1.msra.mxu0 %v519
    %544 = vmatprep.subr.mxu0 0.0
    %545 = vmatpush1.msra.mxu0 %v520
    %546 = vmatprep.subr.mxu0 0.0
    %547 = vmatpush1.msra.mxu0 %v521
    %548 = vmatprep.subr.mxu0 0.0
    %549 = vmatpush1.msra.mxu0 %v522
    %550 = vmatprep.subr.mxu0 0.0
    %551 = vmatpush1.msra.mxu0 %v523
    %552 = vmatprep.subr.mxu0 0.0
    %553 = vmatpush1.msra.mxu0 %v524
    %554 = vmatprep.subr.mxu0 0.0
    %555 = vmatpush1.msra.mxu0 %v525
    %556 = vmatprep.subr.mxu0 0.0
    %557 = vmatpush1.msra.mxu0 %v526
    %558 = vmatprep.subr.mxu0 0.0
    %559 = vmatpush1.msra.mxu0 %v527
    %560 = vmatprep.subr.mxu0 0.0
    %561 = vmatpush1.msra.mxu0 %v528
    %562 = vmatprep.subr.mxu0 0.0
    %563 = vmatpush1.msra.mxu0 %v529
    %564 = vmatprep.subr.mxu0 0.0
    %565 = vmatpush1.msra.mxu0 %v530
    %566 = vmatprep.subr.mxu0 0.0
    %567 = vmatpush1.msra.mxu0 %v531
    %568 = vmatprep.subr.mxu0 0.0
    %569 = vmatpush1.msra.mxu0 %v532
    %570 = vmatprep.subr.mxu0 0.0
    %571 = vmatpush1.msra.mxu0 %v533
    %572 = vmatprep.subr.mxu0 0.0
    %573 = vmatpush1.msra.mxu0 %v534
    %574 = vmatprep.subr.mxu0 0.0
    %575 = vmatpush1.msra.mxu0 0.0
    %576 = vmatprep.subr.mxu0 0.0
    %577 = vmatpush1.msra.mxu0 0.0
    %578 = vmatprep.subr.mxu0 0.0
    %579 = vmatpush1.msra.mxu0 0.0
    %580 = vmatprep.subr.mxu0 0.0
    %581 = vmatpush1.msra.mxu0 0.0
    %582 = vmatprep.subr.mxu0 0.0
    %583 = vmatpush1.msra.mxu0 0.0
    %584 = vmatprep.subr.mxu0 0.0
    %585 = vmatpush1.msra.mxu0 0.0
    %586 = vmatprep.subr.mxu0 0.0
    %587 = vmatpush1.msra.mxu0 0.0
    %588 = vmatprep.subr.mxu0 0.0
    %589 = vmatpush1.msra.mxu0 0.0
    %590 = vmatprep.subr.mxu0 0.0
    %591 = vmatpush1.msra.mxu0 0.0
    %592 = vmatprep.subr.mxu0 0.0
    %593 = vmatpush1.msra.mxu0 0.0
    %594 = vmatprep.subr.mxu0 0.0
    %595 = vmatpush1.msra.mxu0 0.0
    %596 = vmatprep.subr.mxu0 0.0
    %597 = vmatpush1.msra.mxu0 0.0
    %598 = vmatprep.subr.mxu0 0.0
    %599 = vmatpush1.msra.mxu0 0.0
    %600 = vmatprep.subr.mxu0 0.0
    %601 = vmatpush1.msra.mxu0 0.0
    %602 = vmatprep.subr.mxu0 0.0
    %603 = vmatpush1.msra.mxu0 0.0
    %604 = vmatprep.subr.mxu0 0.0
    %605 = vmatpush1.msra.mxu0 0.0
    %606 = vmatprep.mubr.f32.mxu0 0.0
    %607 = vmatmul.mubr.f32.gmra.mrb[0].mxu0 %v518
    %v608 = vpop.f32.mrb[0].mxu0
    %v609 = vadd.f32 %v540, %v608
    %v610 = vpop.f32.mrb[0].mxu0
    %611 = vdwg.mxu0
    %v612 = vmul.f32 %v609, 0.01
    %v613 = vmax.f32 %v609, %v612
    %v614 = vld [vmem:[#allocation13] sm:$0xff]
    %v615 = vld [vmem:[#allocation13 + $0x8] sm:$0xff]
    %v616 = vld [vmem:[#allocation13 + $0x10] sm:$0xff]
    %v617 = vld [vmem:[#allocation13 + $0x18] sm:$0xff]
    %v618 = vld [vmem:[#allocation13 + $0x20] sm:$0xff]
    %v619 = vld [vmem:[#allocation13 + $0x28] sm:$0xff]
    %v620 = vld [vmem:[#allocation13 + $0x30] sm:$0xff]
    %v621 = vld [vmem:[#allocation13 + $0x38] sm:$0xff]
    %v622 = vld [vmem:[#allocation13 + $0x40] sm:$0xff]
    %v623 = vld [vmem:[#allocation13 + $0x48] sm:$0xff]
    %v624 = vld [vmem:[#allocation13 + $0x50] sm:$0xff]
    %v625 = vld [vmem:[#allocation13 + $0x58] sm:$0xff]
    %v626 = vld [vmem:[#allocation13 + $0x60] sm:$0xff]
    %v627 = vld [vmem:[#allocation13 + $0x68] sm:$0xff]
    %v628 = vld [vmem:[#allocation13 + $0x70] sm:$0xff]
    %v629 = vld [vmem:[#allocation13 + $0x78] sm:$0xff]
    %v630 = vld [vmem:[%s12] sm:$0x1]
    %v632 = vlaneseq
    %v633 = vshrl.u32 %v632, 7
    %v634 = vsub.s32 0, %v633
    %v635 = vrot.slane %v630, %v634
    %637 = vmatprep.subr.mxu0 0.0
    %638 = vmatpush1.msra.mxu0 %v614
    %639 = vmatprep.subr.mxu0 0.0
    %640 = vmatpush1.msra.mxu0 %v615
    %641 = vmatprep.subr.mxu0 0.0
    %642 = vmatpush1.msra.mxu0 %v616
    %643 = vmatprep.subr.mxu0 0.0
    %644 = vmatpush1.msra.mxu0 %v617
    %645 = vmatprep.subr.mxu0 0.0
    %646 = vmatpush1.msra.mxu0 %v618
    %647 = vmatprep.subr.mxu0 0.0
    %648 = vmatpush1.msra.mxu0 %v619
    %649 = vmatprep.subr.mxu0 0.0
    %650 = vmatpush1.msra.mxu0 %v620
    %651 = vmatprep.subr.mxu0 0.0
    %652 = vmatpush1.msra.mxu0 %v621
    %653 = vmatprep.subr.mxu0 0.0
    %654 = vmatpush1.msra.mxu0 %v622
    %655 = vmatprep.subr.mxu0 0.0
    %656 = vmatpush1.msra.mxu0 %v623
    %657 = vmatprep.subr.mxu0 0.0
    %658 = vmatpush1.msra.mxu0 %v624
    %659 = vmatprep.subr.mxu0 0.0
    %660 = vmatpush1.msra.mxu0 %v625
    %661 = vmatprep.subr.mxu0 0.0
    %662 = vmatpush1.msra.mxu0 %v626
    %663 = vmatprep.subr.mxu0 0.0
    %664 = vmatpush1.msra.mxu0 %v627
    %665 = vmatprep.subr.mxu0 0.0
    %666 = vmatpush1.msra.mxu0 %v628
    %667 = vmatprep.subr.mxu0 0.0
    %668 = vmatpush1.msra.mxu0 %v629
    %669 = vmatprep.subr.mxu0 0.0
    %670 = vmatpush1.msra.mxu0 0.0
    %671 = vmatprep.subr.mxu0 0.0
    %672 = vmatpush1.msra.mxu0 0.0
    %673 = vmatprep.subr.mxu0 0.0
    %674 = vmatpush1.msra.mxu0 0.0
    %675 = vmatprep.subr.mxu0 0.0
    %676 = vmatpush1.msra.mxu0 0.0
    %677 = vmatprep.subr.mxu0 0.0
    %678 = vmatpush1.msra.mxu0 0.0
    %679 = vmatprep.subr.mxu0 0.0
    %680 = vmatpush1.msra.mxu0 0.0
    %681 = vmatprep.subr.mxu0 0.0
    %682 = vmatpush1.msra.mxu0 0.0
    %683 = vmatprep.subr.mxu0 0.0
    %684 = vmatpush1.msra.mxu0 0.0
    %685 = vmatprep.subr.mxu0 0.0
    %686 = vmatpush1.msra.mxu0 0.0
    %687 = vmatprep.subr.mxu0 0.0
    %688 = vmatpush1.msra.mxu0 0.0
    %689 = vmatprep.subr.mxu0 0.0
    %690 = vmatpush1.msra.mxu0 0.0
    %691 = vmatprep.subr.mxu0 0.0
    %692 = vmatpush1.msra.mxu0 0.0
    %693 = vmatprep.subr.mxu0 0.0
    %694 = vmatpush1.msra.mxu0 0.0
    %695 = vmatprep.subr.mxu0 0.0
    %696 = vmatpush1.msra.mxu0 0.0
    %697 = vmatprep.subr.mxu0 0.0
    %698 = vmatpush1.msra.mxu0 0.0
    %699 = vmatprep.subr.mxu0 0.0
    %700 = vmatpush1.msra.mxu0 0.0
    %701 = vmatprep.mubr.f32.mxu0 0.0
    %702 = vmatmul.mubr.f32.gmra.mrb[0].mxu0 %v613
    %v703 = vpop.f32.mrb[0].mxu0
    %v704 = vadd.f32 %v635, %v703
    %v705 = vpop.f32.mrb[0].mxu0
    %706 = vdwg.mxu0
    %707 = vst [vmem:[#allocation14] sm:$0xff] %v704
    // Predicated region
    $region82: #{tpu_custom_call.1} parent=1 // pred_check
      _
    $region83: #{tpu_custom_call.1} parent=1 // pred_check_branch
      %709 = sbr.rel (0) target = $region85
    $region84: #{tpu_custom_call.1} parent=1 // pred_region
      %s711 = ssub.s32 128, 128
      %712 = vsyncadd [#allocation4], %s711
      %s714 = sshll.u32 [#allocation14], 4
      %s715 = int_to_ptr.vmem [resolvable:$true] %s714
      %717 = dma.vmem_to_hbm [thread:$0]  %s715, 128, %s13, [#allocation4]
    $region85: #{tpu_custom_call.1} parent=1 // pred_fallthru
      _
    // Predicated region
    $region86: #{tpu_custom_call.1} parent=1 // pred_check
      _
    $region87: #{tpu_custom_call.1} parent=1 // pred_check_branch
      %719 = sbr.rel (0) target = $region89
    $region88: #{tpu_custom_call.1} parent=1 // pred_region
      %720 = dma.done [#allocation4], 128
    $region89: #{tpu_custom_call.1} parent=1 // pred_fallthru
      _
    %721 = vsyncpa [#allocation3], 1
    %722 = vsyncpa [#allocation6], 1
    %723 = vsyncpa [#allocation9], 1
    %724 = vsyncpa [#allocation12], 1
    %725 = vsyncpa [#allocation4], 1

</llo_original>
